<compile_context>
chip_gen: v6e
topology: v6e:2x2x1
jax: 0.10.0
libtpu: 0.0.40
codegen_flags: <defaults>
</compile_context>

<pallas_src>
import functools

import jax
import jax.numpy as jnp
from jax.experimental import pallas as pl
from jax.experimental.pallas import tpu as pltpu


# ---------------------------------------------------------------------------
# Kernel: per-pixel softmax prob of the target class + weighted CE loss.
#   logits_ref : (C, TP)   target_ref : (1, TP)   weight_ref : (C, 1)
#   prob_ref   : (1, TP)   loss_ref   : (1, TP)
# Invalid pixels (ignore_index or padded tail) -> prob = +inf, loss = 0.
# ---------------------------------------------------------------------------
def _prob_loss_kernel(logits_ref, target_ref, weight_ref, prob_ref, loss_ref,
                      *, ignore_index, hw, mask_tail):
    logits = logits_ref[...].astype(jnp.float32)            # (C, TP)
    tgt = target_ref[...]                                    # (1, TP) int32

    valid = tgt != ignore_index
    if mask_tail:
        # last tile may extend past HW: mask the padded lanes
        tp = tgt.shape[1]
        lane = jax.lax.broadcasted_iota(jnp.int32, tgt.shape, 1)
        valid = valid & ((pl.program_id(1) * tp + lane) < hw)
    tgt0 = jnp.where(valid, tgt, 0)                           # ignore -> class 0

    # one-hot of the (cleaned) target along the channel/sublane axis
    cls_iota = jax.lax.broadcasted_iota(jnp.int32, logits.shape, 0)
    onehot = (cls_iota == tgt0).astype(jnp.float32)           # (C, TP)

    # stable log-sum-exp over channels
    m = jnp.max(logits, axis=0, keepdims=True)                # (1, TP)
    e = jnp.exp(logits - m)                                   # (C, TP)
    lse = m + jnp.log(jnp.sum(e, axis=0, keepdims=True))      # (1, TP)

    logit_t = jnp.sum(logits * onehot, axis=0, keepdims=True)       # (1, TP)
    w_t = jnp.sum(weight_ref[...] * onehot, axis=0, keepdims=True)  # (1, TP)

    nll = lse - logit_t                                       # unweighted CE
    prob_t = jnp.exp(-nll)                                    # softmax prob of target (EUP)
    loss = w_t * nll                                          # weighted CE, reduction='none'

    # selects (never multiplies) so garbage/NaN in masked lanes cannot leak
    prob_ref[...] = jnp.where(valid, prob_t, jnp.float32(jnp.inf))
    loss_ref[...] = jnp.where(valid, loss, jnp.float32(0.0))


# ---------------------------------------------------------------------------
# Generation-aware tiling: ~2 MiB of logits per step, VMEM-budget capped,
# grid kept large/even enough for the v7x megacore.
# ---------------------------------------------------------------------------
def _vmem_capacity_bytes():
    try:
        info = pltpu.get_tpu_info()
        cap = getattr(info, "vmem_capacity_bytes", None)
        if cap:
            return int(cap)
    except Exception:
        pass
    return 64 * 1024 * 1024          # conservative default (v7x-sized VMEM)


def _round_up(x, m):
    return ((x + m - 1) // m) * m


def _choose_tiling(hw, c, in_bytes, n):
    vmem_cap = _vmem_capacity_bytes()
    if vmem_cap >= 96 * 1024 * 1024:           # v5e / v6e: 128 MiB physical VMEM
        ws_budget = 80 * 1024 * 1024
        vmem_limit = 96 * 1024 * 1024
    else:                                       # v7x: 64 MiB physical VMEM
        ws_budget = 36 * 1024 * 1024
        vmem_limit = 48 * 1024 * 1024

    # per-step logits DMA target (~2 MiB amortizes the ~0.35 us/step overhead)
    target_step_bytes = 2 * 1024 * 1024
    tile_p = max(128, _round_up(target_step_bytes // (c * in_bytes), 128))
    tile_p = min(tile_p, _round_up(hw, 128))

    # working set: double-buffered logits input + ~4 f32 (C, tile_p) temps
    # (upcast logits, onehot, exp, products) + per-lane rows / output buffers.
    def ws(tp):
        return c * tp * (2 * in_bytes + 4 * 4) + 10 * tp * 4

    while tile_p > 128 and ws(tile_p) > ws_budget:
        tile_p = max(128, _round_up(tile_p // 2, 128))

    # keep >= 8 grid steps so both v7x TensorCores stay busy, but never shrink
    # a step below ~1 MiB of logits traffic (v5e/v6e are single-TC: harmless).
    def steps(tp):
        return n * ((hw + tp - 1) // tp)

    while (tile_p > 256 and steps(tile_p) < 8
           and (tile_p // 2) * c * in_bytes >= 1 * 1024 * 1024):
        tile_p = _round_up(tile_p // 2, 128)

    if tile_p >= hw:
        tile_p = hw                    # single tile: block == full dim
    ntiles = (hw + tile_p - 1) // tile_p
    return tile_p, ntiles, vmem_limit


# ---------------------------------------------------------------------------
# Exact k-th (0-indexed) smallest finite prob, without a sort / top_k.
# Multi-pivot counting search on the f32 bit pattern (all probs >= 0, so the
# int32 bit pattern orders identically).  Each round is one fused
# compare+reduce pass over the data against 128 pivots => ~6 passes total,
# O(P), vs. the O(P log P) sort jax.lax.top_k degenerates to for large k.
# Invalid pixels are +inf, whose bit pattern exceeds every finite pivot, so
# they are never counted.
# ---------------------------------------------------------------------------
_NUM_PIVOTS = 128


def _kth_smallest_finite(prob_flat, k):
    bits = jax.lax.bitcast_convert_type(prob_flat, jnp.int32)
    hi0 = jnp.int32(0x7F7FFFFF)              # largest finite f32
    kp1 = k + 1

    def cond(state):
        lo, hi = state
        return lo < hi

    def body(state):
        lo, hi = state
        step = jnp.maximum((hi - lo) // _NUM_PIVOTS, 1)
        pivots = jnp.minimum(
            lo + jnp.arange(_NUM_PIVOTS, dtype=jnp.int32) * step, hi)
        counts = jnp.sum(bits[:, None] <= pivots[None, :], axis=0)   # (W,)
        pred = counts >= kp1                  # monotone in the pivot value
        new_hi = jnp.min(jnp.where(pred, pivots, hi))
        new_lo = jnp.max(jnp.where(pred, lo, pivots + 1))
        return new_lo, new_hi

    _, hi = jax.lax.while_loop(cond, body, (jnp.int32(0), hi0))
    return jax.lax.bitcast_convert_type(hi, jnp.float32)


# ---------------------------------------------------------------------------
# Wrapper: layout plumbing, threshold and masked reduction (JAX glue).
# ---------------------------------------------------------------------------
def weighted_fs_ohem_ce_loss(predict, target, *, thresh, min_kept=1,
                             weight=None, ignore_index=-1,
                             reduction='elementwise_mean'):
    n, c, h, w = predict.shape
    hw = h * w

    # free reshapes only (no HBM transpose / pad of predict); dtype is passed
    # through untouched (bf16 stays bf16 on the wire; kernel computes in f32)
    logits = predict.reshape(n, c, hw)
    tgt = target.reshape(n, 1, hw).astype(jnp.int32)
    if weight is None:
        weight = jnp.ones((c,), jnp.float32)
    wcol = jnp.asarray(weight, jnp.float32).reshape(c, 1)

    in_bytes = jnp.dtype(predict.dtype).itemsize
    tile_p, ntiles, vmem_limit = _choose_tiling(hw, c, in_bytes, n)
    hw_pad = ntiles * tile_p
    mask_tail = hw_pad != hw

    prob, loss = pl.pallas_call(
        functools.partial(_prob_loss_kernel, ignore_index=ignore_index,
                          hw=hw, mask_tail=mask_tail),
        out_shape=(jax.ShapeDtypeStruct((n, 1, hw_pad), jnp.float32),
                   jax.ShapeDtypeStruct((n, 1, hw_pad), jnp.float32)),
        grid=(n, ntiles),
        in_specs=[pl.BlockSpec((None, c, tile_p), lambda b, i: (b, 0, i)),
                  pl.BlockSpec((None, 1, tile_p), lambda b, i: (b, 0, i)),
                  pl.BlockSpec((c, 1), lambda b, i: (0, 0))],
        out_specs=(pl.BlockSpec((None, 1, tile_p), lambda b, i: (b, 0, i)),
                   pl.BlockSpec((None, 1, tile_p), lambda b, i: (b, 0, i))),
        compiler_params=pltpu.CompilerParams(
            dimension_semantics=("parallel", "parallel"),
            vmem_limit_bytes=vmem_limit),
    )(logits, tgt, wcol)

    prob_flat = prob.reshape(-1)          # invalid / padded pixels == +inf
    loss_flat = loss.reshape(-1)          # invalid / padded pixels == 0

    # TODO(synk): num_valid could be accumulated per tile inside the kernel
    # (SMEM scalar output) to save this extra pass over prob.
    num_valid = jnp.sum(jnp.isfinite(prob_flat)).astype(jnp.int32)

    k = jnp.maximum(jnp.minimum(jnp.int32(min_kept), num_valid - 1), 0)
    min_threshold = _kth_smallest_finite(prob_flat, k)
    threshold = jnp.maximum(min_threshold, jnp.float32(thresh))

    # masked reduction; +inf (invalid / padded) is never selected
    sel = prob_flat < threshold
    total = jnp.sum(jnp.where(sel, loss_flat, 0.0))
    count = jnp.sum(sel.astype(jnp.float32))

    if reduction == 'sum':
        return total
    elif reduction == 'elementwise_mean':
        # PyTorch .mean() of an empty selection yields NaN; guard to 0 instead.
        return total / jnp.maximum(count, 1.0)
    else:
        raise NotImplementedError('Reduction Error!')


# ---------------------------------------------------------------------------
# Pure-JAX reference (mirrors the PyTorch forward) for a silent sanity check.
# ---------------------------------------------------------------------------
def _reference(predict, target, thresh, min_kept, weight, ignore_index,
               reduction):
    prob_out = jax.nn.softmax(predict, axis=1)
    tmp = jnp.where(target == ignore_index, 0, target)
    probv = jnp.take_along_axis(prob_out, tmp[:, None], axis=1)[:, 0].reshape(-1)
    maskv = target.reshape(-1) != ignore_index
    sortp = jnp.sort(jnp.where(maskv, probv, jnp.inf))
    nv = jnp.sum(maskv).astype(jnp.int32)
    k = jnp.minimum(jnp.int32(min_kept), nv - 1)
    threshold = jnp.maximum(sortp[k], jnp.float32(thresh))
    logp = jax.nn.log_softmax(predict, axis=1)
    logp_t = jnp.take_along_axis(logp, tmp[:, None], axis=1)[:, 0].reshape(-1)
    w_t = weight[tmp].reshape(-1)
    lossv = jnp.where(maskv, -w_t * logp_t, 0.0)
    sel = maskv & (probv < threshold)
    total = jnp.sum(jnp.where(sel, lossv, 0.0))
    cnt = jnp.sum(sel).astype(jnp.float32)
    return total if reduction == 'sum' else total / cnt


if __name__ == "__main__":
    key = jax.random.PRNGKey(0)
    k1, k2, k3 = jax.random.split(key, 3)

    N, C, H, W = 2, 4, 16, 16
    ignore_index = -1
    ohem_thresh = 0.7           # configer: loss.params.ohem_thresh
    min_kept = 1
    reduction = 'elementwise_mean'

    predict = jax.random.normal(k1, (N, C, H, W), jnp.float32)
    target = jax.random.randint(k2, (N, H, W), -1, C, jnp.int32)   # includes ignore
    weight = 0.5 + jax.random.uniform(k3, (C,), jnp.float32)

    loss_fn = jax.jit(functools.partial(
        weighted_fs_ohem_ce_loss, thresh=ohem_thresh, min_kept=min_kept,
        ignore_index=ignore_index, reduction=reduction))
    out = loss_fn(predict, target, weight=weight)
    out = jax.block_until_ready(out)

    ref = _reference(predict, target, ohem_thresh, min_kept, weight,
                     ignore_index, reduction)
    assert jnp.allclose(out, ref, rtol=1e-5, atol=1e-5), (out, ref)

    print("KERNEL_OK")
</pallas_src>

<mosaic_0001>
module attributes {stable_mosaic.version = 11 : i64} {
  func.func @_prob_loss_kernel(%arg0: i32, %arg1: i32, %arg2: memref<1x4x256xf32, #tpu.memory_space<vmem>>, %arg3: memref<1x1x256xi32, #tpu.memory_space<vmem>>, %arg4: memref<4x1xf32, #tpu.memory_space<vmem>>, %arg5: memref<1x1x256xf32, #tpu.memory_space<vmem>>, %arg6: memref<1x1x256xf32, #tpu.memory_space<vmem>>) attributes {dimension_semantics = [#tpu.dimension_semantics<parallel>, #tpu.dimension_semantics<parallel>], iteration_bounds = array<i64: 2, 1>, scalar_prefetch = 0 : i64, scratch_operands = 0 : i64, tpu.core_type = #tpu.core_type<tc>, window_params = [{transform_indices = @transform_0, window_bounds = array<i64: 1, 4, 256>}, {transform_indices = @transform_1, window_bounds = array<i64: 1, 1, 256>}, {pipeline_mode = #tpu.pipeline_mode<synchronous>, transform_indices = @transform_2, window_bounds = array<i64: 4, 1>}, {transform_indices = @transform_3, window_bounds = array<i64: 1, 1, 256>}, {transform_indices = @transform_4, window_bounds = array<i64: 1, 1, 256>}]} {
    %c0 = arith.constant 0 : index
    %c0_0 = arith.constant 0 : index
    %c0_1 = arith.constant 0 : index
    %0 = vector.load %arg2[%c0, %c0_0, %c0_1] : memref<1x4x256xf32, #tpu.memory_space<vmem>>, vector<1x4x256xf32>
    %1 = vector.shape_cast %0 : vector<1x4x256xf32> to vector<4x256xf32>
    %c0_2 = arith.constant 0 : index
    %c0_3 = arith.constant 0 : index
    %c0_4 = arith.constant 0 : index
    %2 = vector.load %arg3[%c0_2, %c0_3, %c0_4] : memref<1x1x256xi32, #tpu.memory_space<vmem>>, vector<1x1x256xi32>
    %3 = vector.shape_cast %2 : vector<1x1x256xi32> to vector<1x256xi32>
    %c-1_i32 = arith.constant -1 : i32
    %4 = vector.broadcast %c-1_i32 : i32 to vector<1x256xi32>
    %5 = arith.cmpi ne, %3, %4 : vector<1x256xi32>
    %c0_i32 = arith.constant 0 : i32
    %6 = vector.broadcast %c0_i32 : i32 to vector<1x256xi32>
    %7 = arith.select %5, %3, %6 : vector<1x256xi1>, vector<1x256xi32>
    %8 = tpu.iota {dimensions = array<i32: 0>} : vector<4x256xi32>
    %9 = vector.broadcast %7 : vector<1x256xi32> to vector<4x256xi32>
    %10 = arith.cmpi eq, %8, %9 : vector<4x256xi32>
    %11 = arith.extui %10 : vector<4x256xi1> to vector<4x256xi32>
    %12 = arith.sitofp %11 : vector<4x256xi32> to vector<4x256xf32>
    %cst = arith.constant dense<0xFF800000> : vector<256xf32>
    %13 = vector.multi_reduction <maximumf>, %1, %cst [0] : vector<4x256xf32> to vector<256xf32>
    %14 = vector.shape_cast %13 : vector<256xf32> to vector<1x256xf32>
    %15 = vector.broadcast %14 : vector<1x256xf32> to vector<4x256xf32>
    %16 = arith.subf %1, %15 : vector<4x256xf32>
    %17 = math.exp %16 : vector<4x256xf32>
    %cst_5 = arith.constant dense<0.000000e+00> : vector<256xf32>
    %18 = vector.multi_reduction <add>, %17, %cst_5 [0] : vector<4x256xf32> to vector<256xf32>
    %19 = vector.shape_cast %18 : vector<256xf32> to vector<1x256xf32>
    %20 = math.log %19 : vector<1x256xf32>
    %21 = arith.addf %14, %20 : vector<1x256xf32>
    %22 = arith.mulf %1, %12 : vector<4x256xf32>
    %cst_6 = arith.constant dense<0.000000e+00> : vector<256xf32>
    %23 = vector.multi_reduction <add>, %22, %cst_6 [0] : vector<4x256xf32> to vector<256xf32>
    %24 = vector.shape_cast %23 : vector<256xf32> to vector<1x256xf32>
    %c0_7 = arith.constant 0 : index
    %c0_8 = arith.constant 0 : index
    %25 = vector.load %arg4[%c0_7, %c0_8] : memref<4x1xf32, #tpu.memory_space<vmem>>, vector<4x1xf32>
    %26 = vector.broadcast %25 : vector<4x1xf32> to vector<4x256xf32>
    %27 = arith.mulf %26, %12 : vector<4x256xf32>
    %cst_9 = arith.constant dense<0.000000e+00> : vector<256xf32>
    %28 = vector.multi_reduction <add>, %27, %cst_9 [0] : vector<4x256xf32> to vector<256xf32>
    %29 = vector.shape_cast %28 : vector<256xf32> to vector<1x256xf32>
    %30 = arith.subf %21, %24 : vector<1x256xf32>
    %cst_10 = arith.constant 0.000000e+00 : f32
    %31 = vector.broadcast %cst_10 : f32 to vector<1x256xf32>
    %32 = arith.subf %31, %30 : vector<1x256xf32>
    %33 = math.exp %32 : vector<1x256xf32>
    %34 = arith.mulf %29, %30 : vector<1x256xf32>
    %cst_11 = arith.constant 0x7F800000 : f32
    %35 = vector.broadcast %cst_11 : f32 to vector<1x256xf32>
    %36 = arith.select %5, %33, %35 : vector<1x256xi1>, vector<1x256xf32>
    %c0_12 = arith.constant 0 : index
    %c0_13 = arith.constant 0 : index
    %c0_14 = arith.constant 0 : index
    %37 = vector.load %arg5[%c0_12, %c0_13, %c0_14] : memref<1x1x256xf32, #tpu.memory_space<vmem>>, vector<1x1x256xf32>
    %38 = vector.shape_cast %37 : vector<1x1x256xf32> to vector<1x256xf32>
    %39 = vector.shape_cast %36 : vector<1x256xf32> to vector<1x1x256xf32>
    tpu.vector_store %arg5[%c0_12, %c0_13, %c0_14], %39 {strides = array<i32>} : memref<1x1x256xf32, #tpu.memory_space<vmem>>, vector<1x1x256xf32>,
    %cst_15 = arith.constant 0.000000e+00 : f32
    %40 = vector.broadcast %cst_15 : f32 to vector<1x256xf32>
    %41 = arith.select %5, %34, %40 : vector<1x256xi1>, vector<1x256xf32>
    %c0_16 = arith.constant 0 : index
    %c0_17 = arith.constant 0 : index
    %c0_18 = arith.constant 0 : index
    %42 = vector.load %arg6[%c0_16, %c0_17, %c0_18] : memref<1x1x256xf32, #tpu.memory_space<vmem>>, vector<1x1x256xf32>
    %43 = vector.shape_cast %42 : vector<1x1x256xf32> to vector<1x256xf32>
    %44 = vector.shape_cast %41 : vector<1x256xf32> to vector<1x1x256xf32>
    tpu.vector_store %arg6[%c0_16, %c0_17, %c0_18], %44 {strides = array<i32>} : memref<1x1x256xf32, #tpu.memory_space<vmem>>, vector<1x1x256xf32>,
    return
  }
  func.func @transform_0(%arg0: i32, %arg1: i32) -> (i32, i32, i32) {
    %c0_i32 = arith.constant 0 : i32
    %c0_i32_0 = arith.constant 0 : i32
    return %arg0, %c0_i32, %arg1 : i32, i32, i32
  }
  func.func @transform_1(%arg0: i32, %arg1: i32) -> (i32, i32, i32) {
    %c0_i32 = arith.constant 0 : i32
    %c0_i32_0 = arith.constant 0 : i32
    return %arg0, %c0_i32, %arg1 : i32, i32, i32
  }
  func.func @transform_2(%arg0: i32, %arg1: i32) -> (i32, i32) {
    %c0_i32 = arith.constant 0 : i32
    %c0_i32_0 = arith.constant 0 : i32
    %c0_i32_1 = arith.constant 0 : i32
    return %c0_i32, %c0_i32_0 : i32, i32
  }
  func.func @transform_3(%arg0: i32, %arg1: i32) -> (i32, i32, i32) {
    %c0_i32 = arith.constant 0 : i32
    %c0_i32_0 = arith.constant 0 : i32
    return %arg0, %c0_i32, %arg1 : i32, i32, i32
  }
  func.func @transform_4(%arg0: i32, %arg1: i32) -> (i32, i32, i32) {
    %c0_i32 = arith.constant 0 : i32
    %c0_i32_0 = arith.constant 0 : i32
    return %arg0, %c0_i32, %arg1 : i32, i32, i32
  }
}

</mosaic_0001>

<llo_original>
// kernel: weighted_fs_ohem_ce_loss.1
$region0: #{weighted_fs_ohem_ce_loss.1}
  #allocation0 [shape = 'u32[]', space=smem, size = 0x4, offset = 0x4, fixed_abs, tag = 'smem constant byte address 0x4 - core index']
  #allocation1 [shape = 'u32[144,128]{1,0:T(1,128)}', space=vmem, size = 0x12000, scoped, tag = 'internal scratch']
  %s0 = inlined_call_operand.vmem [shape: f32[2,4,256], index: 0, kind: input, shape index: {}]
  %s1 = inlined_call_operand.vmem [shape: s32[2,1,256], index: 1, kind: input, shape index: {}]
  %s2 = inlined_call_operand.vmem [shape: f32[4,1], index: 2, kind: input, shape index: {}]
  %s3 = inlined_call_operand.vmem [shape: f32[2,1,256], index: 3, kind: output, shape index: {0}]
  %s4 = inlined_call_operand.vmem [shape: f32[2,1,256], index: 4, kind: output, shape index: {1}]
  %5 = xla_tuple %s3, %s4
  %s6 = sld [smem:[#allocation0]]
  $region53: #{weighted_fs_ohem_ce_loss.1} parent=0
    _
  %s8 = ssub.s32 1, %s6
  %s9 = scalar_select 0, %s8, %s6
  loop: start=0, step=1, limit=4
  $region2: #{weighted_fs_ohem_ce_loss.1} parent=0 // loop_pre_header
    _
  $region3: #{weighted_fs_ohem_ce_loss.1} parent=0 // loop_header
    %s11 = sphi 0, %s15
    %p12 = scmp.ge.s32.totalorder %s11, 4
    %s18 = sphi 0, %s30
    %s19 = sphi 0, %s26
    %s20 = sphi 0, %s18
    %s21 = sphi 0, %s19
    %s22 = sphi 0, %s20
    %s23 = sphi 0, %s21
    %s35 = sphi 0, %s37
    %s38 = sphi 0, %s35
    %s39 = sphi 0, %s38
    %s55 = sphi 0, %s39
    %s63 = sphi 0, %s65
    %s66 = sphi 0, %s63
    %s67 = sphi 0, %s66
    %s83 = sphi 0, %s67
    %s87 = sphi 0, %s87
    %s89 = sphi 0, %s87
    %s90 = sphi 0, %s89
    %s104 = sphi 0, %s90
    %s112 = sphi 0, %s114
    %s115 = sphi 0, %s112
    %s116 = sphi 0, %s115
    %s132 = sphi 0, %s116
    %s140 = sphi 0, %s142
    %s143 = sphi 0, %s140
    %s144 = sphi 0, %s143
    %s160 = sphi 0, %s144
  $region4: #{weighted_fs_ohem_ce_loss.1} parent=0 // loop_header_branch
    %14 = sbr.rel (%p12) target = $region8
  $region5: #{weighted_fs_ohem_ce_loss.1} parent=0 // loop_body
    %s16 = ssub.s32 %s11, 1
    %s17 = ssub.s32 %s11, 2
    %s24 = sadd.s32 1, %s19
    %p25 = scmp.ge.s32.totalorder %s24, 1
    %s26 = scalar_select %p25, 0, %s24
    %s27 = sadd.s32 1, %s18
    %s28 = scalar_select %p25, %s27, %s18
    %p29 = scmp.ge.s32.totalorder %s28, 2
    %s30 = scalar_select %p29, 0, %s28
    %s31 = ssub.s32 %s18, %s30
    %s32 = ssub.s32 %s19, %s26
    %s33 = sor.u32 %s31, %s32
    %p34 = scmp.eq.s32.totalorder %s33, 0
    %s36 = sadd.s32 %s35, 1
    %s37 = scalar_select %p34, %s35, %s36
    %p40 = pneg %p34
    %p41 = scmp.eq.s32.totalorder %s11, 1
    %p42 = por %p40, %p41
    %p43 = scmp.ne.s32.totalorder %s35, %s38
    %p44 = scmp.eq.s32.totalorder %s11, 0
    %p45 = por %p43, %p44
    %p46 = scmp.ne.s32.totalorder %s35, %s38
    %p47 = scmp.eq.s32.totalorder %s16, 1
    %p48 = por %p46, %p47
    %p49 = scmp.ne.s32.totalorder %s38, %s39
    %p50 = scmp.eq.s32.totalorder %s16, 0
    %p51 = por %p49, %p50
    %p52 = scmp.ne.s32.totalorder %s38, %s39
    %p53 = scmp.eq.s32.totalorder %s17, 1
    %p54 = por %p52, %p53
    %p56 = scmp.ne.s32.totalorder %s39, %s55
    %p57 = scmp.eq.s32.totalorder %s17, 0
    %p58 = por %p56, %p57
    %s59 = ssub.s32 %s18, %s30
    %s60 = ssub.s32 %s19, %s26
    %s61 = sor.u32 %s59, %s60
    %p62 = scmp.eq.s32.totalorder %s61, 0
    %s64 = sadd.s32 %s63, 1
    %s65 = scalar_select %p62, %s63, %s64
    %p68 = pneg %p62
    %p69 = scmp.eq.s32.totalorder %s11, 1
    %p70 = por %p68, %p69
    %p71 = scmp.ne.s32.totalorder %s63, %s66
    %p72 = scmp.eq.s32.totalorder %s11, 0
    %p73 = por %p71, %p72
    %p74 = scmp.ne.s32.totalorder %s63, %s66
    %p75 = scmp.eq.s32.totalorder %s16, 1
    %p76 = por %p74, %p75
    %p77 = scmp.ne.s32.totalorder %s66, %s67
    %p78 = scmp.eq.s32.totalorder %s16, 0
    %p79 = por %p77, %p78
    %p80 = scmp.ne.s32.totalorder %s66, %s67
    %p81 = scmp.eq.s32.totalorder %s17, 1
    %p82 = por %p80, %p81
    %p84 = scmp.ne.s32.totalorder %s67, %s83
    %p85 = scmp.eq.s32.totalorder %s17, 0
    %p86 = por %p84, %p85
    %s88 = sadd.s32 %s87, 1
    %p91 = scmp.eq.s32.totalorder %s11, 1
    %p92 = scmp.ne.s32.totalorder %s87, %s89
    %p93 = scmp.eq.s32.totalorder %s11, 0
    %p94 = por %p92, %p93
    %p95 = scmp.ne.s32.totalorder %s87, %s89
    %p96 = scmp.eq.s32.totalorder %s16, 1
    %p97 = por %p95, %p96
    %p98 = scmp.ne.s32.totalorder %s89, %s90
    %p99 = scmp.eq.s32.totalorder %s16, 0
    %p100 = por %p98, %p99
    %p101 = scmp.ne.s32.totalorder %s89, %s90
    %p102 = scmp.eq.s32.totalorder %s17, 1
    %p103 = por %p101, %p102
    %p105 = scmp.ne.s32.totalorder %s90, %s104
    %p106 = scmp.eq.s32.totalorder %s17, 0
    %p107 = por %p105, %p106
    %s108 = ssub.s32 %s18, %s30
    %s109 = ssub.s32 %s19, %s26
    %s110 = sor.u32 %s108, %s109
    %p111 = scmp.eq.s32.totalorder %s110, 0
    %s113 = sadd.s32 %s112, 1
    %s114 = scalar_select %p111, %s112, %s113
    %p117 = pneg %p111
    %p118 = scmp.eq.s32.totalorder %s11, 1
    %p119 = por %p117, %p118
    %p120 = scmp.ne.s32.totalorder %s112, %s115
    %p121 = scmp.eq.s32.totalorder %s11, 0
    %p122 = por %p120, %p121
    %p123 = scmp.ne.s32.totalorder %s112, %s115
    %p124 = scmp.eq.s32.totalorder %s16, 1
    %p125 = por %p123, %p124
    %p126 = scmp.ne.s32.totalorder %s115, %s116
    %p127 = scmp.eq.s32.totalorder %s16, 0
    %p128 = por %p126, %p127
    %p129 = scmp.ne.s32.totalorder %s115, %s116
    %p130 = scmp.eq.s32.totalorder %s17, 1
    %p131 = por %p129, %p130
    %p133 = scmp.ne.s32.totalorder %s116, %s132
    %p134 = scmp.eq.s32.totalorder %s17, 0
    %p135 = por %p133, %p134
    %s136 = ssub.s32 %s18, %s30
    %s137 = ssub.s32 %s19, %s26
    %s138 = sor.u32 %s136, %s137
    %p139 = scmp.eq.s32.totalorder %s138, 0
    %s141 = sadd.s32 %s140, 1
    %s142 = scalar_select %p139, %s140, %s141
    %p145 = pneg %p139
    %p146 = scmp.eq.s32.totalorder %s11, 1
    %p147 = por %p145, %p146
    %p148 = scmp.ne.s32.totalorder %s140, %s143
    %p149 = scmp.eq.s32.totalorder %s11, 0
    %p150 = por %p148, %p149
    %p151 = scmp.ne.s32.totalorder %s140, %s143
    %p152 = scmp.eq.s32.totalorder %s16, 1
    %p153 = por %p151, %p152
    %p154 = scmp.ne.s32.totalorder %s143, %s144
    %p155 = scmp.eq.s32.totalorder %s16, 0
    %p156 = por %p154, %p155
    %p157 = scmp.ne.s32.totalorder %s143, %s144
    %p158 = scmp.eq.s32.totalorder %s17, 1
    %p159 = por %p157, %p158
    %p161 = scmp.ne.s32.totalorder %s144, %s160
    %p162 = scmp.eq.s32.totalorder %s17, 0
    %p163 = por %p161, %p162
    %p164 = scmp.le.s32.totalorder 1, %s11
    %p165 = scmp.lt.s32.totalorder %s11, 3
    %p166 = pnand %p164, %p165
    %p167 = pneg %p166
    // Predicated region
    $region9: #{weighted_fs_ohem_ce_loss.1} parent=5 // pred_check
      _
    $region10: #{weighted_fs_ohem_ce_loss.1} parent=5 // pred_check_branch
      %169 = sbr.rel (%p166) target = $region12
    $region11: #{weighted_fs_ohem_ce_loss.1} parent=5 // pred_region
      %s170 = ssub.s32 %s11, 1
      // Predicated region
      $region13: #{weighted_fs_ohem_ce_loss.1} parent=11 // pred_check
        %p171 = pneg %p100
      $region14: #{weighted_fs_ohem_ce_loss.1} parent=11 // pred_check_branch
        %173 = sbr.rel (%p171) target = $region16
      $region15: #{weighted_fs_ohem_ce_loss.1} parent=11 // pred_region
        _
      $region16: #{weighted_fs_ohem_ce_loss.1} parent=11 // pred_fallthru
        _
    $region12: #{weighted_fs_ohem_ce_loss.1} parent=5 // pred_fallthru
      _
    %p174 = scmp.lt.s32.totalorder %s11, 2
    // Predicated region
    $region17: #{weighted_fs_ohem_ce_loss.1} parent=5 // pred_check
      %p175 = pneg %p174
    $region18: #{weighted_fs_ohem_ce_loss.1} parent=5 // pred_check_branch
      %177 = sbr.rel (%p175) target = $region20
    $region19: #{weighted_fs_ohem_ce_loss.1} parent=5 // pred_region
      // Predicated region
      $region21: #{weighted_fs_ohem_ce_loss.1} parent=19 // pred_check
        %p178 = pneg %p45
      $region22: #{weighted_fs_ohem_ce_loss.1} parent=19 // pred_check_branch
        %180 = sbr.rel (%p178) target = $region24
      $region23: #{weighted_fs_ohem_ce_loss.1} parent=19 // pred_region
        %s181 = smul.u32 2, %s19
        %p182 = scmp.lt.s32.totalorder %s18, 1
        %s183 = scalar_select %p182, %s18, 1
        %p184 = scmp.lt.s32.totalorder %s181, 1
        %s185 = scalar_select %p184, %s181, 1
        %s186 = smul.addr %s183, 2
        %s187 = sadd.s32 %s185, %s186
        %s188 = smul.addr %s187, 4
        %s189 = scalar_lea.vmem %s0, %s188
        %s190 = smul.u32 2, %s19
      $region24: #{weighted_fs_ohem_ce_loss.1} parent=19 // pred_fallthru
        _
      // Predicated region
      $region25: #{weighted_fs_ohem_ce_loss.1} parent=19 // pred_check
        %p191 = pneg %p73
      $region26: #{weighted_fs_ohem_ce_loss.1} parent=19 // pred_check_branch
        %193 = sbr.rel (%p191) target = $region28
      $region27: #{weighted_fs_ohem_ce_loss.1} parent=19 // pred_region
        %s194 = smul.u32 2, %s19
        %p195 = scmp.lt.s32.totalorder %s18, 1
        %s196 = scalar_select %p195, %s18, 1
        %p197 = scmp.lt.s32.totalorder %s194, 1
        %s198 = scalar_select %p197, %s194, 1
        %s199 = smul.addr %s196, 2
        %s200 = sadd.s32 %s198, %s199
        %s201 = scalar_lea.vmem %s1, %s200
        %s202 = smul.u32 2, %s19
      $region28: #{weighted_fs_ohem_ce_loss.1} parent=19 // pred_fallthru
        _
    $region20: #{weighted_fs_ohem_ce_loss.1} parent=5 // pred_fallthru
      _
    %p203 = scmp.le.s32.totalorder 1, %s11
    %p204 = scmp.lt.s32.totalorder %s11, 3
    %p205 = pnand %p203, %p204
    %p206 = pneg %p205
    // Predicated region
    $region29: #{weighted_fs_ohem_ce_loss.1} parent=5 // pred_check
      _
    $region30: #{weighted_fs_ohem_ce_loss.1} parent=5 // pred_check_branch
      %208 = sbr.rel (%p205) target = $region32
    $region31: #{weighted_fs_ohem_ce_loss.1} parent=5 // pred_region
      %s209 = ssub.s32 %s11, 1
      %s210 = smul.u32 2, %s21
      %p211 = scmp.lt.s32.totalorder %s20, 1
      %s212 = scalar_select %p211, %s20, 1
      %p213 = scmp.lt.s32.totalorder %s210, 1
      %s214 = scalar_select %p213, %s210, 1
      %s215 = smul.addr %s212, 2
      %s216 = sadd.s32 %s214, %s215
      %s217 = smul.addr %s216, 4
      %s218 = scalar_lea.vmem %s0, %s217
      %p219 = pneg %p51
      %p220 = pneg %p48
      %s221 = smul.u32 2, %s21
      %p222 = scmp.lt.s32.totalorder %s20, 1
      %s223 = scalar_select %p222, %s20, 1
      %p224 = scmp.lt.s32.totalorder %s221, 1
      %s225 = scalar_select %p224, %s221, 1
      %s226 = smul.addr %s223, 2
      %s227 = sadd.s32 %s225, %s226
      %s228 = scalar_lea.vmem %s1, %s227
      %p229 = pneg %p79
      %p230 = pneg %p76
      %p231 = pneg %p100
      %p232 = pneg %p97
      %p233 = pneg %p128
      %p234 = pneg %p125
      %s235 = smul.u32 2, %s21
      %p236 = scmp.lt.s32.totalorder %s20, 1
      %s237 = scalar_select %p236, %s20, 1
      %p238 = scmp.lt.s32.totalorder %s235, 1
      %s239 = scalar_select %p238, %s235, 1
      %s240 = smul.addr %s237, 2
      %s241 = sadd.s32 %s239, %s240
      %s242 = scalar_lea.vmem %s3, %s241
      %p243 = pneg %p156
      %p244 = pneg %p153
      %s245 = smul.u32 2, %s21
      %p246 = scmp.lt.s32.totalorder %s20, 1
      %s247 = scalar_select %p246, %s20, 1
      %p248 = scmp.lt.s32.totalorder %s245, 1
      %s249 = scalar_select %p248, %s245, 1
      %s250 = smul.addr %s247, 2
      %s251 = sadd.s32 %s249, %s250
      %s252 = scalar_lea.vmem %s4, %s251
      %s253 = smul.u32 2, %s21
      %p254 = scmp.lt.s32.totalorder %s20, 1
      %s255 = scalar_select %p254, %s20, 1
      %p256 = scmp.lt.s32.totalorder %s253, 1
      %s257 = scalar_select %p256, %s253, 1
      %s258 = smul.addr %s255, 2
      %s259 = sadd.s32 %s257, %s258
      %s260 = smul.addr %s259, 4
      %s261 = scalar_lea.vmem %s0, %s260
      %s262 = smul.u32 2, %s21
      %s263 = smul.u32 2, %s21
      %p264 = scmp.lt.s32.totalorder %s20, 1
      %s265 = scalar_select %p264, %s20, 1
      %p266 = scmp.lt.s32.totalorder %s263, 1
      %s267 = scalar_select %p266, %s263, 1
      %s268 = smul.addr %s265, 2
      %s269 = sadd.s32 %s267, %s268
      %s270 = scalar_lea.vmem %s1, %s269
      %s271 = smul.u32 2, %s21
      %s272 = smul.u32 2, %s21
      %p273 = scmp.lt.s32.totalorder %s20, 1
      %s274 = scalar_select %p273, %s20, 1
      %p275 = scmp.lt.s32.totalorder %s272, 1
      %s276 = scalar_select %p275, %s272, 1
      %s277 = smul.addr %s274, 2
      %s278 = sadd.s32 %s276, %s277
      %s279 = scalar_lea.vmem %s3, %s278
      %s280 = smul.u32 2, %s21
      %s281 = smul.u32 2, %s21
      %p282 = scmp.lt.s32.totalorder %s20, 1
      %s283 = scalar_select %p282, %s20, 1
      %p284 = scmp.lt.s32.totalorder %s281, 1
      %s285 = scalar_select %p284, %s281, 1
      %s286 = smul.addr %s283, 2
      %s287 = sadd.s32 %s285, %s286
      %s288 = scalar_lea.vmem %s4, %s287
      %s289 = smul.u32 2, %s21
      %v290 = vld [vmem:[%s261] sm:$0xff]
      %v291 = vld [vmem:[%s270] sm:$0x3]
      %vm292 = vcmp.ne.s32.totalorder %v291, 4294967295
      %v293 = vsel %vm292, %v291, 0
      %v294 = vlaneseq
      %v295 = vshrl.u32 %v294, 7
      %v296 = vlaneseq
      %v297 = vshrl.u32 %v296, 7
      %v298 = vsub.s32 0, %v297
      %v299 = vrot.slane %v293, %v298
      %v300 = vlaneseq
      %v301 = vshrl.u32 %v300, 7
      %v302 = vsub.s32 1, %v301
      %v303 = vrot.slane %v293, %v302
      %vm304 = vcmp.eq.s32.totalorder %v295, %v299
      %vm305 = vcmp.eq.s32.totalorder %v295, %v303
      %v306 = vsel %vm304, 1, 0
      %v307 = vsel %vm305, 1, 0
      %v308 = vcvt.s32.f32 %v306
      %v309 = vcvt.s32.f32 %v307
      %v311 = vcombine.high %v290, %v290
      %vm313 = vcmask 1043456
      %v314 = vsel %vm313, %v290, -inf
      %v315 = vrot.slane %v314, 4
      %v316 = vmax.f32 %v314, %v315
      %v317 = vrot.slane %v316, 2
      %v318 = vmax.f32 %v316, %v317
      %v319 = vrot.slane %v318, 1
      %v320 = vmax.f32 %v318, %v319
      %v321 = vsel %vm313, %v311, -inf
      %v322 = vrot.slane %v321, 4
      %v323 = vmax.f32 %v321, %v322
      %v324 = vrot.slane %v323, 2
      %v325 = vmax.f32 %v323, %v324
      %v326 = vrot.slane %v325, 1
      %v327 = vmax.f32 %v325, %v326
      %v330 = vcombine.low %v320, %v327
      %v332 = vsub.f32 %v290, %v330
      %v333 = vmul.f32 %v332, 1.442695
      %v334 = vpow.pop %v333
      %v336 = vcombine.high %v334, %v334
      %v338 = vsel %vm313, %v334, 0.0
      %v339 = vrot.slane %v338, 4
      %v340 = vadd.f32 %v338, %v339
      %v341 = vrot.slane %v340, 2
      %v342 = vadd.f32 %v340, %v341
      %v343 = vrot.slane %v342, 1
      %v344 = vadd.f32 %v342, %v343
      %v345 = vsel %vm313, %v336, 0.0
      %v346 = vrot.slane %v345, 4
      %v347 = vadd.f32 %v345, %v346
      %v348 = vrot.slane %v347, 2
      %v349 = vadd.f32 %v347, %v348
      %v350 = vrot.slane %v349, 1
      %v351 = vadd.f32 %v349, %v350
      %v352 = vlog2.pop %v344
      %v353 = vmul.f32 %v352, 0.6931472
      %v354 = vlog2.pop %v351
      %v355 = vmul.f32 %v354, 0.6931472
      %v356 = vadd.f32 %v320, %v353
      %v357 = vadd.f32 %v327, %v355
      %v360 = vcombine.low %v308, %v309
      %v362 = vmul.f32 %v290, %v360
      %v364 = vcombine.high %v362, %v362
      %v366 = vsel %vm313, %v362, 0.0
      %v367 = vrot.slane %v366, 4
      %v368 = vadd.f32 %v366, %v367
      %v369 = vrot.slane %v368, 2
      %v370 = vadd.f32 %v368, %v369
      %v371 = vrot.slane %v370, 1
      %v372 = vadd.f32 %v370, %v371
      %v373 = vsel %vm313, %v364, 0.0
      %v374 = vrot.slane %v373, 4
      %v375 = vadd.f32 %v373, %v374
      %v376 = vrot.slane %v375, 2
      %v377 = vadd.f32 %v375, %v376
      %v378 = vrot.slane %v377, 1
      %v379 = vadd.f32 %v377, %v378
      %v380 = vld [vmem:[%s2] sm:$0xf]
      %382 = vset.pattern.permute.xlu0 0
      %383 = vperm.xlu0 %382, %v380
      %v384 = vpop.permute.xlu0 %383
      %v386 = vmul.f32 %v384, %v308
      %v387 = vmul.f32 %v384, %v309
      %v388 = vsel %vm313, %v386, 0.0
      %v389 = vrot.slane %v388, 4
      %v390 = vadd.f32 %v388, %v389
      %v391 = vrot.slane %v390, 2
      %v392 = vadd.f32 %v390, %v391
      %v393 = vrot.slane %v392, 1
      %v394 = vadd.f32 %v392, %v393
      %v395 = vsel %vm313, %v387, 0.0
      %v396 = vrot.slane %v395, 4
      %v397 = vadd.f32 %v395, %v396
      %v398 = vrot.slane %v397, 2
      %v399 = vadd.f32 %v397, %v398
      %v400 = vrot.slane %v399, 1
      %v401 = vadd.f32 %v399, %v400
      %v402 = vsub.f32 %v356, %v372
      %v403 = vsub.f32 %v357, %v379
      %v404 = vsub.f32 0.0, %v402
      %v405 = vsub.f32 0.0, %v403
      %v406 = vmul.f32 %v404, 1.442695
      %v407 = vpow.pop %v406
      %v408 = vmul.f32 %v405, 1.442695
      %v409 = vpow.pop %v408
      %v410 = vmul.f32 %v394, %v402
      %v411 = vmul.f32 %v401, %v403
      %v414 = vcombine.low %v407, %v409
      %v416 = vunpack.c.l.s4 1966171168
      %v417 = vunpack.c.0.s8 %v416
      %v418 = vlaneseq
      %v419 = vshrl.u32 %v418, 7
      %v420 = vsub.s32 %v417, %v419
      %v421 = vrot.slane %v414, %v420
      %v423 = vunpack.c.l.s4 1966171168
      %v424 = vunpack.c.0.s8 %v423
      %v425 = vlaneseq
      %v426 = vshrl.u32 %v425, 7
      %v427 = vsub.s32 %v424, %v426
      %v428 = vrot.slane %v421, %v427
      %v430 = vsel %vm292, %v428, inf
      %v431 = vlaneseq
      %vm432 = vcmp.ge.s32.totalorder %v431, 0
      %vm433 = vcmp.lt.s32.totalorder %v431, 256
      %vm434 = vmand %vm432, %vm433
      %435 = vst.msk [vmem:[%s279] sm:$0x3] %vm434, %v430
      %v438 = vcombine.low %v410, %v411
      %v440 = vunpack.c.l.s4 1966171168
      %v441 = vunpack.c.0.s8 %v440
      %v442 = vlaneseq
      %v443 = vshrl.u32 %v442, 7
      %v444 = vsub.s32 %v441, %v443
      %v445 = vrot.slane %v438, %v444
      %v447 = vunpack.c.l.s4 1966171168
      %v448 = vunpack.c.0.s8 %v447
      %v449 = vlaneseq
      %v450 = vshrl.u32 %v449, 7
      %v451 = vsub.s32 %v448, %v450
      %v452 = vrot.slane %v445, %v451
      %v454 = vsel %vm292, %v452, 0.0
      %455 = vst.msk [vmem:[%s288] sm:$0x3] %vm434, %v454
      %s456 = smul.u32 2, %s21
      %p457 = scmp.lt.s32.totalorder %s20, 1
      %s458 = scalar_select %p457, %s20, 1
      %p459 = scmp.lt.s32.totalorder %s456, 1
      %s460 = scalar_select %p459, %s456, 1
      %s461 = smul.addr %s458, 2
      %s462 = sadd.s32 %s460, %s461
      %s463 = scalar_lea.vmem %s3, %s462
      %s464 = smul.u32 2, %s21
      %p465 = scmp.lt.s32.totalorder %s20, 1
      %s466 = scalar_select %p465, %s20, 1
      %p467 = scmp.lt.s32.totalorder %s464, 1
      %s468 = scalar_select %p467, %s464, 1
      %s469 = smul.addr %s466, 2
      %s470 = sadd.s32 %s468, %s469
      %s471 = scalar_lea.vmem %s4, %s470
      // Predicated region
      $region33: #{weighted_fs_ohem_ce_loss.1} parent=31 // pred_check
        %p472 = pneg %p125
      $region34: #{weighted_fs_ohem_ce_loss.1} parent=31 // pred_check_branch
        %474 = sbr.rel (%p472) target = $region36
      $region35: #{weighted_fs_ohem_ce_loss.1} parent=31 // pred_region
        %s475 = smul.u32 2, %s21
      $region36: #{weighted_fs_ohem_ce_loss.1} parent=31 // pred_fallthru
        _
      // Predicated region
      $region37: #{weighted_fs_ohem_ce_loss.1} parent=31 // pred_check
        %p476 = pneg %p153
      $region38: #{weighted_fs_ohem_ce_loss.1} parent=31 // pred_check_branch
        %478 = sbr.rel (%p476) target = $region40
      $region39: #{weighted_fs_ohem_ce_loss.1} parent=31 // pred_region
        %s479 = smul.u32 2, %s21
      $region40: #{weighted_fs_ohem_ce_loss.1} parent=31 // pred_fallthru
        _
    $region32: #{weighted_fs_ohem_ce_loss.1} parent=5 // pred_fallthru
      _
    %p480 = scmp.le.s32.totalorder 2, %s11
    // Predicated region
    $region41: #{weighted_fs_ohem_ce_loss.1} parent=5 // pred_check
      %p481 = pneg %p480
    $region42: #{weighted_fs_ohem_ce_loss.1} parent=5 // pred_check_branch
      %483 = sbr.rel (%p481) target = $region44
    $region43: #{weighted_fs_ohem_ce_loss.1} parent=5 // pred_region
      %s484 = ssub.s32 %s11, 2
      // Predicated region
      $region45: #{weighted_fs_ohem_ce_loss.1} parent=43 // pred_check
        %p485 = pneg %p131
      $region46: #{weighted_fs_ohem_ce_loss.1} parent=43 // pred_check_branch
        %487 = sbr.rel (%p485) target = $region48
      $region47: #{weighted_fs_ohem_ce_loss.1} parent=43 // pred_region
        %s488 = smul.u32 2, %s23
        %p489 = scmp.lt.s32.totalorder %s22, 1
        %s490 = scalar_select %p489, %s22, 1
        %p491 = scmp.lt.s32.totalorder %s488, 1
        %s492 = scalar_select %p491, %s488, 1
        %s493 = smul.addr %s490, 2
        %s494 = sadd.s32 %s492, %s493
        %s495 = scalar_lea.vmem %s3, %s494
      $region48: #{weighted_fs_ohem_ce_loss.1} parent=43 // pred_fallthru
        _
      // Predicated region
      $region49: #{weighted_fs_ohem_ce_loss.1} parent=43 // pred_check
        %p496 = pneg %p159
      $region50: #{weighted_fs_ohem_ce_loss.1} parent=43 // pred_check_branch
        %498 = sbr.rel (%p496) target = $region52
      $region51: #{weighted_fs_ohem_ce_loss.1} parent=43 // pred_region
        %s499 = smul.u32 2, %s23
        %p500 = scmp.lt.s32.totalorder %s22, 1
        %s501 = scalar_select %p500, %s22, 1
        %p502 = scmp.lt.s32.totalorder %s499, 1
        %s503 = scalar_select %p502, %s499, 1
        %s504 = smul.addr %s501, 2
        %s505 = sadd.s32 %s503, %s504
        %s506 = scalar_lea.vmem %s4, %s505
      $region52: #{weighted_fs_ohem_ce_loss.1} parent=43 // pred_fallthru
        _
    $region44: #{weighted_fs_ohem_ce_loss.1} parent=5 // pred_fallthru
      _
  $region6: #{weighted_fs_ohem_ce_loss.1} parent=0 // loop_footer
    %s15 = sadd.s32 1, %s11
  $region7: #{weighted_fs_ohem_ce_loss.1} parent=0 // loop_footer_branch
    %10 = sbr.rel target = $region3
  $region8: #{weighted_fs_ohem_ce_loss.1} parent=0 // loop_exit
    _

</llo_original>
